<compile_context>
chip_gen: v7x
topology: tpu7x:2x2x1
jax: 0.10.0
libtpu: 0.0.40
codegen_flags: <defaults>
</compile_context>

<pallas_src>
import math
from itertools import combinations

import numpy as np
import jax
import jax.numpy as jnp
from jax import lax
from jax.experimental import pallas as pl
from jax.experimental.pallas import tpu as pltpu

EPS = 1e-8


def round_up(x, m):
    return ((x + m - 1) // m) * m


def band_split(num_bins=257, sr=16000):
    bandwidth_1000 = int(np.floor(1000 / (sr / 2.0) * num_bins))
    band_width = [bandwidth_1000] * 7
    band_width.append(num_bins - int(np.sum(band_width)))
    nband = len(band_width)
    return band_width, nband


def _row_plan(N, max_tile=512):
    """Row tile + (possibly padded) row count for row-tiled matmul kernels."""
    if N <= max_tile:
        return N, N                     # single full block, no padding
    for t in (512, 384, 256, 128):
        if N % t == 0:
            return t, N
    # TODO(synk): ragged tail for large N; pad fallback (never hit in tests).
    return 256, round_up(N, 256)


def _t_plan(T, max_tile=128):
    """T tile for the fused spatial kernel (<=128, divides T when possible)."""
    if T <= max_tile:
        return T
    for t in (128, 64, 32, 16, 8):
        if T % t == 0:
            return t
    # TODO(synk): ragged T; fall back to a single full-T block per batch.
    return T


# ----------------------------------------------------------------------------
# Pallas kernels
# ----------------------------------------------------------------------------

def _stft_kernel(frames_ref, w_ref, out_ref):
    out_ref[...] = jnp.dot(frames_ref[...], w_ref[...],
                           preferred_element_type=jnp.float32)


def stft_pallas(frames, w_fused):
    """frames [N, FR]; w_fused [FR, 2*Fp] = [wcos | pad | wsin | pad].
    Returns [N, 2*Fp]."""
    N, FR = frames.shape
    CP = w_fused.shape[1]
    rt, Np = _row_plan(N)
    if Np != N:
        frames = jnp.pad(frames, ((0, Np - N), (0, 0)))
    out = pl.pallas_call(
        _stft_kernel,
        out_shape=jax.ShapeDtypeStruct((Np, CP), jnp.float32),
        grid=(Np // rt,),
        in_specs=[pl.BlockSpec((rt, FR), lambda i: (i, 0)),
                  pl.BlockSpec((FR, CP), lambda i: (0, 0))],
        out_specs=pl.BlockSpec((rt, CP), lambda i: (i, 0)),
        compiler_params=pltpu.CompilerParams(dimension_semantics=("parallel",)),
    )(frames, w_fused)
    return out[:N] if Np != N else out


def fused_spatial_pallas(spec4, pair_left, pair_right, Fp, *,
                         steer=None, tpd_r=None, tpd_i=None, want_mean=False):
    """One fused pass over the mic spectra.

    spec4 [B, M, T, 2*Fp]   re in [..., :Fp], im in [..., Fp:]
    steer [P, 2*Fp, VBp]    rows [:Fp] = cos, rows [Fp:] = -sin (block-diag over bands)
    tpd_* [B, P, C, Fp]     target phase differences (lane padded)

    Returns a dict with any of:
      'srp'  [B, T, VBp]    sum_p relu(gr@cos - gi@sin)
      'df'   [B, C, T, Fp]  sum_p (tpd_r*cos(ipd) + tpd_i*sin(ipd))
      'mean' [B, T, 2*Fp]   mic-mean spectrum

    The PHAT cross-spectrum gr/gi lives only in VMEM/vregs; mic spectra are
    DMA'd exactly once per (batch, T-tile) block.
    """
    B, M, T, F2 = spec4.shape
    want_srp = steer is not None
    want_df = tpd_r is not None
    P = len(pair_left)
    C = int(tpd_r.shape[2]) if want_df else 0
    VBp = int(steer.shape[2]) if want_srp else 0
    Tt = _t_plan(T)
    grid = (B, T // Tt)

    left_idx = [int(v) for v in pair_left]
    right_idx = [int(v) for v in pair_right]

    in_arrays = [spec4]
    in_specs = [pl.BlockSpec((1, M, Tt, F2), lambda b, t: (b, 0, t, 0))]
    if want_srp:
        in_arrays.append(steer)
        in_specs.append(pl.BlockSpec((P, 2 * Fp, VBp), lambda b, t: (0, 0, 0)))
    if want_df:
        in_arrays += [tpd_r, tpd_i]
        in_specs += [pl.BlockSpec((1, P, C, Fp), lambda b, t: (b, 0, 0, 0)),
                     pl.BlockSpec((1, P, C, Fp), lambda b, t: (b, 0, 0, 0))]

    out_shapes, out_specs = [], []
    if want_srp:
        out_shapes.append(jax.ShapeDtypeStruct((B, T, VBp), jnp.float32))
        out_specs.append(pl.BlockSpec((1, Tt, VBp), lambda b, t: (b, t, 0)))
    if want_df:
        out_shapes.append(jax.ShapeDtypeStruct((B, C, T, Fp), jnp.float32))
        out_specs.append(pl.BlockSpec((1, C, Tt, Fp), lambda b, t: (b, 0, t, 0)))
    if want_mean:
        out_shapes.append(jax.ShapeDtypeStruct((B, T, F2), jnp.float32))
        out_specs.append(pl.BlockSpec((1, Tt, F2), lambda b, t: (b, t, 0)))

    def kernel(*refs):
        i = 0
        spec_ref = refs[i]; i += 1
        steer_ref = tr_ref = ti_ref = None
        if want_srp:
            steer_ref = refs[i]; i += 1
        if want_df:
            tr_ref = refs[i]; ti_ref = refs[i + 1]; i += 2
        srp_ref = df_ref = mean_ref = None
        if want_srp:
            srp_ref = refs[i]; i += 1
        if want_df:
            df_ref = refs[i]; i += 1
        if want_mean:
            mean_ref = refs[i]; i += 1

        # Load every mic spectrum exactly once for this (batch, T-tile) block.
        xs = [spec_ref[0, m] for m in range(M)]                 # M x [Tt, 2Fp]
        if want_mean:
            acc = xs[0]
            for m in range(1, M):
                acc = acc + xs[m]
            mean_ref[0] = acc * (1.0 / M)

        res = [x[:, :Fp] for x in xs]                           # lane-aligned
        ims = [x[:, Fp:] for x in xs]

        srp_acc = None
        df_accs = [None] * C
        for p in range(P):
            l = left_idx[p]
            r = right_idx[p]
            lr, li = res[l], ims[l]
            rr, ri = res[r], ims[r]
            # PHAT normalized cross-spectrum  S_l * conj(S_r) / (|S_l||S_r| + eps)
            cc_r = lr * rr + li * ri
            cc_i = li * rr - lr * ri
            mag = jnp.sqrt((lr * lr + li * li) * (rr * rr + ri * ri))
            inv = 1.0 / (mag + EPS)
            gr = cc_r * inv                                      # == cos(ipd)
            gi = cc_i * inv                                      # == -sin(ipd)
            if want_srp:
                st = steer_ref[p]                                # [2Fp, VBp]
                val = (jnp.dot(gr, st[:Fp], preferred_element_type=jnp.float32)
                       + jnp.dot(gi, st[Fp:], preferred_element_type=jnp.float32))
                val = jnp.maximum(val, 0.0)                      # relu per pair
                srp_acc = val if srp_acc is None else srp_acc + val
            if want_df:
                tr_p = tr_ref[0, p]                              # [C, Fp]
                ti_p = ti_ref[0, p]
                for c in range(C):
                    # Re(conj(tpd)*exp(j*ipd)) = tpd_r*cos(ipd) + tpd_i*sin(ipd)
                    term = tr_p[c:c + 1, :] * gr - ti_p[c:c + 1, :] * gi
                    df_accs[c] = term if df_accs[c] is None else df_accs[c] + term
        if want_srp:
            srp_ref[0] = srp_acc
        if want_df:
            for c in range(C):
                df_ref[0, c] = df_accs[c]

    outs = pl.pallas_call(
        kernel,
        out_shape=tuple(out_shapes),
        grid=grid,
        in_specs=in_specs,
        out_specs=tuple(out_specs),
        compiler_params=pltpu.CompilerParams(
            dimension_semantics=("parallel", "parallel")),
    )(*in_arrays)
    if not isinstance(outs, (list, tuple)):
        outs = (outs,)

    result, i = {}, 0
    if want_srp:
        result['srp'] = outs[i]; i += 1
    if want_df:
        result['df'] = outs[i]; i += 1
    if want_mean:
        result['mean'] = outs[i]; i += 1
    return result


def _tac_kernel(x_ref, w1t_ref, b1_ref, w2t_ref, b2_ref, o_ref):
    h = jnp.tanh(jnp.dot(x_ref[...], w1t_ref[...],
                         preferred_element_type=jnp.float32) + b1_ref[...])
    o_ref[...] = jnp.tanh(jnp.dot(h, w2t_ref[...],
                                  preferred_element_type=jnp.float32)
                          + b2_ref[...])


def tac_pallas(x, w1t, b1row, w2t, b2row):
    """x [R, Fp] rows = (b, c, t); 1x1 Conv1d -> Tanh -> 1x1 Conv1d -> Tanh.
    w1t [Fp, H], b1row [1, H], w2t [H, Fp], b2row [1, Fp] (all lane padded)."""
    R, Fp = x.shape
    H = w1t.shape[1]
    rt, Rp = _row_plan(R)
    if Rp != R:
        x = jnp.pad(x, ((0, Rp - R), (0, 0)))
    y = pl.pallas_call(
        _tac_kernel,
        out_shape=jax.ShapeDtypeStruct((Rp, Fp), jnp.float32),
        grid=(Rp // rt,),
        in_specs=[pl.BlockSpec((rt, Fp), lambda i: (i, 0)),
                  pl.BlockSpec((Fp, H), lambda i: (0, 0)),
                  pl.BlockSpec((1, H), lambda i: (0, 0)),
                  pl.BlockSpec((H, Fp), lambda i: (0, 0)),
                  pl.BlockSpec((1, Fp), lambda i: (0, 0))],
        out_specs=pl.BlockSpec((rt, Fp), lambda i: (i, 0)),
        compiler_params=pltpu.CompilerParams(dimension_semantics=("parallel",)),
    )(x, w1t, b1row, w2t, b2row)
    return y[:R] if Rp != R else y


# ----------------------------------------------------------------------------
# Synthetic ad-hoc array (the PyTorch forward takes an `array` object as input)
# ----------------------------------------------------------------------------

class AdhocArray:
    def __init__(self, mic_positions, sr=16000, snd_velocity=343.0):
        self.mic_position = np.asarray(mic_positions, np.float64)
        self.n_mic = self.mic_position.shape[0]
        self.sr = sr
        self.snd_velocity = snd_velocity
        self.mic_pairs = np.asarray(list(combinations(range(self.n_mic), 2)))
        self.n_mic_pairs = len(self.mic_pairs)
        self.pair_left = self.mic_pairs[:, 0]
        self.pair_right = self.mic_pairs[:, 1]
        diff = self.mic_position[:, None] - self.mic_position[None]
        self.mic_distance = np.sqrt((diff ** 2).sum(-1))

    def get_zone_TPD_number(self, loc_info, A, num_bins, sr, sort=False):
        # TODO(synk): original array class not provided; deterministic synthetic
        # far-field target-phase-difference: tpd[b,p,c,f] = exp(1j*2*pi*f*tau).
        freqs = np.linspace(0.0, sr // 2, num_bins)                      # [F]
        d = self.mic_distance[self.pair_left, self.pair_right]           # [P]
        tau = (d[None, :, None] * np.cos(loc_info)[:, None, :]
               / self.snd_velocity)                                      # [B,P,C]
        ang = 2.0 * math.pi * tau[..., None] * freqs[None, None, None, :]
        return (np.cos(ang).astype(np.float32), np.sin(ang).astype(np.float32))


# ----------------------------------------------------------------------------
# FeatureComputerAdhoc (JAX/Pallas version)
# ----------------------------------------------------------------------------

class FeatureComputerAdhocPallas:
    def __init__(self, universal_conf, key):
        self.conf = universal_conf
        self.frame_size = self.conf['frame_size']
        self.frame_hop = self.conf['frame_hop']
        self.nFFT = self.conf['nFFT']
        self.sr = self.conf['sr']
        self.input_feature = self.conf['feature']
        self.num_bins = self.nFFT // 2 + 1
        self.Fp = round_up(self.num_bins, 128)          # lane-dense padded F
        self.epsilon = EPS
        self.band_width, self.nband = band_split(self.num_bins, self.sr)
        assert 'mic_arch' not in self.conf
        assert self.frame_size == self.nFFT, "script assumes win_length == nFFT"

        if self.conf['spec'] in ('mean', 'reference'):
            self.spec_num = 1
        elif isinstance(self.conf['spec'], list):
            self.spec_num = len(self.conf['spec'])
        else:
            raise NotImplementedError(self.conf['spec'])

        for feat in ('IPD', 'ILD', 'GCC'):
            if feat in self.input_feature:
                # TODO(synk): ResRNN (LSTM) per-band aggregation has no clean
                # small Pallas equivalent; config does not exercise it.
                raise NotImplementedError(feat)

        if 'SRP_PHAT' in self.input_feature:
            self.srp_phat_num = self.conf['SRP_PHAT_num']

        if 'DF1D' in self.input_feature:
            assert self.conf['sample_method'] == 'number'
            self.zone_agg = self.conf['zone_agg']
            self.A = self.conf['A']
            if self.zone_agg in ('TAA', 'TAC'):
                H = 256
                F = self.num_bins
                Fp = self.Fp
                k1, k2, k3, k4 = jax.random.split(key, 4)
                bnd1 = 1.0 / math.sqrt(F)
                bnd2 = 1.0 / math.sqrt(H)
                w1 = jax.random.uniform(k1, (H, F), jnp.float32, -bnd1, bnd1)
                b1 = jax.random.uniform(k2, (1, H), jnp.float32, -bnd1, bnd1)
                w2 = jax.random.uniform(k3, (F, H), jnp.float32, -bnd2, bnd2)
                b2 = jax.random.uniform(k4, (1, F), jnp.float32, -bnd2, bnd2)
                # Zero-padded weights so the lane-padded DF input needs no slicing.
                self.w1t = jnp.pad(jnp.transpose(w1), ((0, Fp - F), (0, 0)))   # [Fp,H]
                self.b1row = b1                                                # [1,H]
                self.w2t = jnp.pad(jnp.transpose(w2), ((0, 0), (0, Fp - F)))   # [H,Fp]
                self.b2row = jnp.pad(b2, ((0, 0), (0, Fp - F)))                # [1,Fp]
                self.df_num = self.A if self.zone_agg == 'TAC' else 1
            elif self.zone_agg is None or self.zone_agg == '':
                self.df_num = self.A
            else:
                # TODO(synk): RNN* zone aggregation (ResRNN) not implemented.
                raise NotImplementedError(self.zone_agg)

        # Fused windowed DFT matrix [wcos | pad | wsin | pad], lane-dense 2*Fp.
        # hann periodic (torch.hann_window default), torch.stft sign convention.
        n = np.arange(self.nFFT)
        win = 0.5 - 0.5 * np.cos(2.0 * np.pi * n / self.frame_size)
        k = np.arange(self.num_bins)
        ang = 2.0 * np.pi * np.outer(n, k) / self.nFFT
        w_fused = np.zeros((self.nFFT, 2 * self.Fp), np.float32)
        w_fused[:, :self.num_bins] = win[:, None] * np.cos(ang)
        w_fused[:, self.Fp:self.Fp + self.num_bins] = -(win[:, None] * np.sin(ang))
        self.w_fused = jnp.asarray(w_fused)

    # ------------------------------------------------------------------
    def _stft(self, mixture):
        B, M, L = mixture.shape
        T = 1 + (L - self.nFFT) // self.frame_hop
        idx = (np.arange(T)[:, None] * self.frame_hop
               + np.arange(self.nFFT)[None, :])
        # TODO(synk): framing gather kept on host; folding it into the STFT
        # kernel (pl.ANY signal ref + strided in-kernel reads) would remove the
        # overlapped-frames HBM copy.
        frames = mixture[:, :, idx].reshape(B * M * T, self.nFFT)
        out = stft_pallas(frames, self.w_fused)               # [N, 2*Fp]
        return out.reshape(B, M, T, 2 * self.Fp)              # [B, M, T, 2*Fp]

    def _build_steering(self, array, V):
        """Combined block-diagonal steering [P, 2*Fp, VBp]: rows [:Fp] cos,
        rows [Fp:] -sin; columns grouped per band, lane-padded to VBp."""
        P = array.n_mic_pairs
        F = self.num_bins
        Fp = self.Fp
        VB = self.nband * V
        VBp = round_up(VB, 128)
        sep_freq = np.linspace(0.0, self.sr // 2, F)
        d = array.mic_distance[array.pair_left, array.pair_right]        # [P]
        max_tdoa = d / array.snd_velocity
        tdoa = np.stack([np.linspace(-m, m, V) for m in max_tdoa], axis=0)  # [P,V]
        steer = np.zeros((P, 2 * Fp, VBp), np.float32)
        band_idx = 0
        for b in range(self.nband):
            bw = int(self.band_width[b])
            f_sub = sep_freq[band_idx:band_idx + bw]                      # [bw]
            ang = 2.0 * np.pi * tdoa[:, None, :] * f_sub[None, :, None]   # [P,bw,V]
            steer[:, band_idx:band_idx + bw, b * V:(b + 1) * V] = np.cos(ang)
            steer[:, Fp + band_idx:Fp + band_idx + bw,
                  b * V:(b + 1) * V] = -np.sin(ang)
            band_idx += bw
        return jnp.asarray(steer), VBp

    # ------------------------------------------------------------------
    def __call__(self, mixture, array):
        mixture = mixture[:, :array.n_mic]
        B = mixture.shape[0]
        F = self.num_bins
        Fp = self.Fp
        spec4 = self._stft(mixture)                            # [B, M, T, 2*Fp]
        T = spec4.shape[2]
        feature_dict = {}

        want_srp = 'SRP_PHAT' in self.input_feature
        want_df = 'DF1D' in self.input_feature
        want_mean = self.conf['spec'] == 'mean'

        steer = tpd_r = tpd_i = None
        if want_srp:
            steer, _ = self._build_steering(array, self.srp_phat_num)
        if want_df:
            loc = np.asarray(self.conf['loc_info'][0], np.float32) * np.pi / 180.0
            loc_info = np.repeat(loc[None], B, axis=0)                   # [B, A]
            tr_np, ti_np = array.get_zone_TPD_number(
                loc_info, self.A, self.num_bins, self.sr,
                sort=self.conf['DFsort'])
            pad = Fp - F
            tpd_r = jnp.asarray(np.pad(tr_np, ((0, 0), (0, 0), (0, 0), (0, pad))))
            tpd_i = jnp.asarray(np.pad(ti_np, ((0, 0), (0, 0), (0, 0), (0, pad))))

        outs = {}
        if want_srp or want_df:
            outs = fused_spatial_pallas(
                spec4, array.pair_left, array.pair_right, Fp,
                steer=steer, tpd_r=tpd_r, tpd_i=tpd_i, want_mean=want_mean)

        if want_srp:
            V = self.srp_phat_num
            srp_all = outs['srp']                              # [B, T, VBp]
            srp_phats = []
            for b in range(self.nband):
                blk = srp_all[:, :, b * V:(b + 1) * V]         # [B, T, V]
                srp_phats.append(jnp.transpose(blk, (0, 2, 1)))  # [B, V, T]
            feature_dict['SRP_PHAT'] = srp_phats

        if want_df:
            df_tf = outs['df']                                 # [B, C, T, Fp]
            if self.zone_agg in ('TAA', 'TAC'):
                b_, c_, t_, fp_ = df_tf.shape
                x = df_tf.reshape(b_ * c_ * t_, fp_)
                y = tac_pallas(x, self.w1t, self.b1row, self.w2t, self.b2row)
                df_tf = y.reshape(b_, c_, t_, fp_)
                if self.zone_agg == 'TAA':
                    df_tf = jnp.sum(df_tf, axis=1, keepdims=True)
            # TODO(synk): final [..,T,F]->[..,F,T] transpose could be absorbed
            # into a transposed TAC out_spec; kept as a small XLA transpose.
            feature_dict['DF1D'] = jnp.transpose(df_tf[..., :F], (0, 1, 3, 2))

        if self.conf['spec'] == 'mean':
            ms = outs['mean'] if 'mean' in outs else jnp.mean(spec4, axis=1)
            sre = ms[..., :F]
            sim = ms[..., Fp:Fp + F]
            mix_stft = jnp.transpose(sre + 1j * sim, (0, 2, 1))[:, None]
        elif self.conf['spec'] == 'reference':
            ref = self.conf['ref_mic_idx']
            sre = spec4[:, ref, :, :F]
            sim = spec4[:, ref, :, Fp:Fp + F]
            mix_stft = jnp.transpose(sre + 1j * sim, (0, 2, 1))[:, None]
        else:
            sel = list(self.conf['spec'])
            sre = spec4[:, sel, :, :F]
            sim = spec4[:, sel, :, Fp:Fp + F]
            mix_stft = jnp.transpose(sre + 1j * sim, (0, 1, 3, 2))
        return mix_stft, feature_dict


# ----------------------------------------------------------------------------

if __name__ == "__main__":
    conf = {
        'frame_size': 32,
        'frame_hop': 16,
        'nFFT': 32,
        'sr': 16000,
        'feature': ['SRP_PHAT', 'DF1D'],
        'spec': 'mean',
        'SRP_PHAT_num': 8,
        'sample_method': 'number',
        'zone_agg': 'TAC',
        'A': 4,
        'loc_info': [[0.0, 90.0, 180.0, 270.0]],
        'DFsort': False,
    }

    key = jax.random.PRNGKey(0)
    k_sig, k_par = jax.random.split(key)

    B = 2
    n_mic = 4
    T_frames = 8
    L = conf['frame_hop'] * (T_frames - 1) + conf['nFFT']   # 144 samples
    # one extra channel to exercise mixture[:, :array.n_mic]
    mixture = jax.random.normal(k_sig, (B, n_mic + 1, L), jnp.float32)

    mic_pos = np.array([[0.00, 0.00],
                        [0.05, 0.00],
                        [0.00, 0.05],
                        [0.05, 0.05]])
    array = AdhocArray(mic_pos, sr=conf['sr'])

    fc = FeatureComputerAdhocPallas(conf, k_par)
    mix_stft, feats = fc(mixture, array)
    jax.block_until_ready((mix_stft, feats))

    assert mix_stft.shape == (B, 1, conf['nFFT'] // 2 + 1, T_frames)
    assert feats['DF1D'].shape == (B, conf['A'], conf['nFFT'] // 2 + 1, T_frames)
    assert len(feats['SRP_PHAT']) == fc.nband
    assert feats['SRP_PHAT'][0].shape == (B, conf['SRP_PHAT_num'], T_frames)
    print("KERNEL_OK")
</pallas_src>

<mosaic_0001>
module attributes {stable_mosaic.version = 11 : i64} {
  func.func @_stft_kernel(%arg0: i32, %arg1: memref<64x32xf32, #tpu.memory_space<vmem>>, %arg2: memref<32x256xf32, #tpu.memory_space<vmem>>, %arg3: memref<64x256xf32, #tpu.memory_space<vmem>>) attributes {dimension_semantics = [#tpu.dimension_semantics<parallel>], iteration_bounds = array<i64: 1>, scalar_prefetch = 0 : i64, scratch_operands = 0 : i64, tpu.core_type = #tpu.core_type<tc>, window_params = [{transform_indices = @transform_0, window_bounds = array<i64: 64, 32>}, {pipeline_mode = #tpu.pipeline_mode<synchronous>, transform_indices = @transform_1, window_bounds = array<i64: 32, 256>}, {transform_indices = @transform_2, window_bounds = array<i64: 64, 256>}]} {
    %c0 = arith.constant 0 : index
    %c0_0 = arith.constant 0 : index
    %0 = vector.load %arg1[%c0, %c0_0] : memref<64x32xf32, #tpu.memory_space<vmem>>, vector<64x32xf32>
    %c0_1 = arith.constant 0 : index
    %c0_2 = arith.constant 0 : index
    %1 = vector.load %arg2[%c0_1, %c0_2] : memref<32x256xf32, #tpu.memory_space<vmem>>, vector<32x256xf32>
    %cst = arith.constant dense<0.000000e+00> : vector<64x256xf32>
    %2 = tpu.matmul %0, %1, %cst {dimension_numbers = #tpu.dot_dimension_numbers<[1], [0], [0], [1], [0, 0, 1, 1], [], []>} : vector<64x32xf32>, vector<32x256xf32>, vector<64x256xf32> -> vector<64x256xf32>
    %c0_3 = arith.constant 0 : index
    %c0_4 = arith.constant 0 : index
    %3 = vector.load %arg3[%c0_3, %c0_4] : memref<64x256xf32, #tpu.memory_space<vmem>>, vector<64x256xf32>
    tpu.vector_store %arg3[%c0_3, %c0_4], %2 {strides = array<i32>} : memref<64x256xf32, #tpu.memory_space<vmem>>, vector<64x256xf32>,
    return
  }
  func.func @transform_0(%arg0: i32) -> (i32, i32) {
    %c0_i32 = arith.constant 0 : i32
    %c0_i32_0 = arith.constant 0 : i32
    return %arg0, %c0_i32 : i32, i32
  }
  func.func @transform_1(%arg0: i32) -> (i32, i32) {
    %c0_i32 = arith.constant 0 : i32
    %c0_i32_0 = arith.constant 0 : i32
    %c0_i32_1 = arith.constant 0 : i32
    return %c0_i32, %c0_i32_0 : i32, i32
  }
  func.func @transform_2(%arg0: i32) -> (i32, i32) {
    %c0_i32 = arith.constant 0 : i32
    %c0_i32_0 = arith.constant 0 : i32
    return %arg0, %c0_i32 : i32, i32
  }
}

</mosaic_0001>

<llo_original>
// kernel: tpu_custom_call.1
$region0: #{tpu_custom_call.1}
  #allocation0 [shape = 'u32[]', space=smem, size = 0x4, offset = 0x4, fixed_abs, tag = 'smem constant byte address 0x4 - core index']
  #allocation1 [shape = 'u32[144,128]{1,0:T(1,128)}', space=vmem, size = 0x12000, scoped, tag = 'internal scratch']
  %s0 = inlined_call_operand.vmem [shape: f32[64,32], index: 0, kind: input, shape index: {}]
  %s1 = inlined_call_operand.vmem [shape: f32[32,256], index: 1, kind: input, shape index: {}]
  %s2 = inlined_call_operand.hbm [shape: f32[64,256], index: 2, kind: output, shape index: {}]
  %s3 = sld [smem:[#allocation0]]
  $region18: #{tpu_custom_call.1} parent=0
    _
  %s5 = ssub.s32 1, %s3
  %s6 = scalar_select 0, %s5, %s3
  $region1: #{tpu_custom_call.1} parent=0
    #allocation2 [shape = 'u8[65536]{0}', space=vmem, size = 0x10000, scoped, tag = 'output window, operand 0, single buffered']
    #allocation3 [shape = 's32[1]{0}', space=sflag, size = 0x4, scoped, tag = 'scoped memory for tpu_custom_call.1']
    %7 = vsyncpa [#allocation3], 0
    // Predicated region
    $region2: #{tpu_custom_call.1} parent=1 // pred_check
      _
    $region3: #{tpu_custom_call.1} parent=1 // pred_check_branch
      %9 = sbr.rel (0) target = $region5
    $region4: #{tpu_custom_call.1} parent=1 // pred_region
      _
    $region5: #{tpu_custom_call.1} parent=1 // pred_fallthru
      _
    // Predicated region
    $region6: #{tpu_custom_call.1} parent=1 // pred_check
      _
    $region7: #{tpu_custom_call.1} parent=1 // pred_check_branch
      %11 = sbr.rel (0) target = $region9
    $region8: #{tpu_custom_call.1} parent=1 // pred_region
      _
    $region9: #{tpu_custom_call.1} parent=1 // pred_fallthru
      _
    %v12 = vld [vmem:[%s0] sm:$0xff]
    %v13 = vld [vmem:[%s0 + $0x8] sm:$0xff]
    %v14 = vld [vmem:[%s0 + $0x10] sm:$0xff]
    %v15 = vld [vmem:[%s0 + $0x18] sm:$0xff]
    %v16 = vld [vmem:[%s0 + $0x20] sm:$0xff]
    %v17 = vld [vmem:[%s0 + $0x28] sm:$0xff]
    %v18 = vld [vmem:[%s0 + $0x30] sm:$0xff]
    %v19 = vld [vmem:[%s0 + $0x38] sm:$0xff]
    %v20 = vld [vmem:[%s1] sm:$0xff]
    %v21 = vld [vmem:[%s1 + $0x8] sm:$0xff]
    %v22 = vld [vmem:[%s1 + $0x10] sm:$0xff]
    %v23 = vld [vmem:[%s1 + $0x18] sm:$0xff]
    %v24 = vld [vmem:[%s1 + $0x20] sm:$0xff]
    %v25 = vld [vmem:[%s1 + $0x28] sm:$0xff]
    %v26 = vld [vmem:[%s1 + $0x30] sm:$0xff]
    %v27 = vld [vmem:[%s1 + $0x38] sm:$0xff]
    %vm28 = vcmask 261120
    %v30 = vsel %vm28, %v12, 0
    %v33 = vsel %vm28, %v13, 0
    %v36 = vsel %vm28, %v14, 0
    %v39 = vsel %vm28, %v15, 0
    %v42 = vsel %vm28, %v16, 0
    %v45 = vsel %vm28, %v17, 0
    %v48 = vsel %vm28, %v18, 0
    %v51 = vsel %vm28, %v19, 0
    %53 = vmatprep.subr.mxu0 %v21
    %54 = vmatpush1.msra.mxu0 %v20
    %55 = vmatprep.subr.mxu0 %v23
    %56 = vmatpush1.msra.mxu0 %v22
    %57 = vmatprep.subr.mxu0 %v25
    %58 = vmatpush1.msra.mxu0 %v24
    %59 = vmatprep.subr.mxu0 %v27
    %60 = vmatpush1.msra.mxu0 %v26
    %61 = vmatprep.subr.mxu0 0.0
    %62 = vmatpush1.msra.mxu0 0.0
    %63 = vmatprep.subr.mxu0 0.0
    %64 = vmatpush1.msra.mxu0 0.0
    %65 = vmatprep.subr.mxu0 0.0
    %66 = vmatpush1.msra.mxu0 0.0
    %67 = vmatprep.subr.mxu0 0.0
    %68 = vmatpush1.msra.mxu0 0.0
    %69 = vmatprep.subr.mxu0 0.0
    %70 = vmatpush1.msra.mxu0 0.0
    %71 = vmatprep.subr.mxu0 0.0
    %72 = vmatpush1.msra.mxu0 0.0
    %73 = vmatprep.subr.mxu0 0.0
    %74 = vmatpush1.msra.mxu0 0.0
    %75 = vmatprep.subr.mxu0 0.0
    %76 = vmatpush1.msra.mxu0 0.0
    %77 = vmatprep.subr.mxu0 0.0
    %78 = vmatpush1.msra.mxu0 0.0
    %79 = vmatprep.subr.mxu0 0.0
    %80 = vmatpush1.msra.mxu0 0.0
    %81 = vmatprep.subr.mxu0 0.0
    %82 = vmatpush1.msra.mxu0 0.0
    %83 = vmatprep.subr.mxu0 0.0
    %84 = vmatpush1.msra.mxu0 0.0
    %85 = vmatprep.subr.mxu0 0.0
    %86 = vmatpush1.msra.mxu0 0.0
    %87 = vmatprep.subr.mxu0 0.0
    %88 = vmatpush1.msra.mxu0 0.0
    %89 = vmatprep.subr.mxu0 0.0
    %90 = vmatpush1.msra.mxu0 0.0
    %91 = vmatprep.subr.mxu0 0.0
    %92 = vmatpush1.msra.mxu0 0.0
    %93 = vmatprep.subr.mxu0 0.0
    %94 = vmatpush1.msra.mxu0 0.0
    %95 = vmatprep.subr.mxu0 0.0
    %96 = vmatpush1.msra.mxu0 0.0
    %97 = vmatprep.subr.mxu0 0.0
    %98 = vmatpush1.msra.mxu0 0.0
    %99 = vmatprep.subr.mxu0 0.0
    %100 = vmatpush1.msra.mxu0 0.0
    %101 = vmatprep.subr.mxu0 0.0
    %102 = vmatpush1.msra.mxu0 0.0
    %103 = vmatprep.subr.mxu0 0.0
    %104 = vmatpush1.msra.mxu0 0.0
    %105 = vmatprep.subr.mxu0 0.0
    %106 = vmatpush1.msra.mxu0 0.0
    %107 = vmatprep.subr.mxu0 0.0
    %108 = vmatpush1.msra.mxu0 0.0
    %109 = vmatprep.subr.mxu0 0.0
    %110 = vmatpush1.msra.mxu0 0.0
    %111 = vmatprep.subr.mxu0 0.0
    %112 = vmatpush1.msra.mxu0 0.0
    %113 = vmatprep.subr.mxu0 0.0
    %114 = vmatpush1.msra.mxu0 0.0
    %115 = vmatprep.subr.mxu0 0.0
    %116 = vmatpush1.msra.mxu0 0.0
    %117 = vmatprep.mubr.f32.mxu0 0.0
    %118 = vmatmul.mubr.f32.gmra.mrb[0].mxu0 %v30
    %v119 = vpop.f32.mrb[0].mxu0
    %v120 = vadd.f32 0.0, %v119
    %v121 = vpop.f32.mrb[0].mxu0
    %v122 = vadd.f32 0.0, %v121
    %123 = vmatprep.mubr.f32.mxu0 0.0
    %124 = vmatmul.mubr.f32.gmra.mrb[0].mxu0 %v33
    %v125 = vpop.f32.mrb[0].mxu0
    %v126 = vadd.f32 0.0, %v125
    %v127 = vpop.f32.mrb[0].mxu0
    %v128 = vadd.f32 0.0, %v127
    %129 = vmatprep.mubr.f32.mxu0 0.0
    %130 = vmatmul.mubr.f32.gmra.mrb[0].mxu0 %v36
    %v131 = vpop.f32.mrb[0].mxu0
    %v132 = vadd.f32 0.0, %v131
    %v133 = vpop.f32.mrb[0].mxu0
    %v134 = vadd.f32 0.0, %v133
    %135 = vmatprep.mubr.f32.mxu0 0.0
    %136 = vmatmul.mubr.f32.gmra.mrb[0].mxu0 %v39
    %v137 = vpop.f32.mrb[0].mxu0
    %v138 = vadd.f32 0.0, %v137
    %v139 = vpop.f32.mrb[0].mxu0
    %v140 = vadd.f32 0.0, %v139
    %141 = vmatprep.mubr.f32.mxu0 0.0
    %142 = vmatmul.mubr.f32.gmra.mrb[0].mxu0 %v42
    %v143 = vpop.f32.mrb[0].mxu0
    %v144 = vadd.f32 0.0, %v143
    %v145 = vpop.f32.mrb[0].mxu0
    %v146 = vadd.f32 0.0, %v145
    %147 = vmatprep.mubr.f32.mxu0 0.0
    %148 = vmatmul.mubr.f32.gmra.mrb[0].mxu0 %v45
    %v149 = vpop.f32.mrb[0].mxu0
    %v150 = vadd.f32 0.0, %v149
    %v151 = vpop.f32.mrb[0].mxu0
    %v152 = vadd.f32 0.0, %v151
    %153 = vmatprep.mubr.f32.mxu0 0.0
    %154 = vmatmul.mubr.f32.gmra.mrb[0].mxu0 %v48
    %v155 = vpop.f32.mrb[0].mxu0
    %v156 = vadd.f32 0.0, %v155
    %v157 = vpop.f32.mrb[0].mxu0
    %v158 = vadd.f32 0.0, %v157
    %159 = vmatprep.mubr.f32.mxu0 0.0
    %160 = vmatmul.mubr.f32.gmra.mrb[0].mxu0 %v51
    %v161 = vpop.f32.mrb[0].mxu0
    %v162 = vadd.f32 0.0, %v161
    %v163 = vpop.f32.mrb[0].mxu0
    %v164 = vadd.f32 0.0, %v163
    %165 = vdwg.mxu0
    %166 = vst [vmem:[#allocation2] sm:$0xff] %v120
    %167 = vst [vmem:[#allocation2 + $0x8] sm:$0xff] %v122
    %168 = vst [vmem:[#allocation2 + $0x10] sm:$0xff] %v126
    %169 = vst [vmem:[#allocation2 + $0x18] sm:$0xff] %v128
    %170 = vst [vmem:[#allocation2 + $0x20] sm:$0xff] %v132
    %171 = vst [vmem:[#allocation2 + $0x28] sm:$0xff] %v134
    %172 = vst [vmem:[#allocation2 + $0x30] sm:$0xff] %v138
    %173 = vst [vmem:[#allocation2 + $0x38] sm:$0xff] %v140
    %174 = vst [vmem:[#allocation2 + $0x40] sm:$0xff] %v144
    %175 = vst [vmem:[#allocation2 + $0x48] sm:$0xff] %v146
    %176 = vst [vmem:[#allocation2 + $0x50] sm:$0xff] %v150
    %177 = vst [vmem:[#allocation2 + $0x58] sm:$0xff] %v152
    %178 = vst [vmem:[#allocation2 + $0x60] sm:$0xff] %v156
    %179 = vst [vmem:[#allocation2 + $0x68] sm:$0xff] %v158
    %180 = vst [vmem:[#allocation2 + $0x70] sm:$0xff] %v162
    %181 = vst [vmem:[#allocation2 + $0x78] sm:$0xff] %v164
    // Predicated region
    $region10: #{tpu_custom_call.1} parent=1 // pred_check
      _
    $region11: #{tpu_custom_call.1} parent=1 // pred_check_branch
      %183 = sbr.rel (0) target = $region13
    $region12: #{tpu_custom_call.1} parent=1 // pred_region
      %s185 = ssub.s32 2048, 2048
      %186 = vsyncadd [#allocation3], %s185
      %s187 = sshll.u32 [#allocation2], 4
      %s188 = int_to_ptr.vmem [resolvable:$true] %s187
      %193 = dma.vmem_to_hbm [thread:$0]  %s188, 2048, %s2, [#allocation3], 256, 256, 16
    $region13: #{tpu_custom_call.1} parent=1 // pred_fallthru
      _
    // Predicated region
    $region14: #{tpu_custom_call.1} parent=1 // pred_check
      _
    $region15: #{tpu_custom_call.1} parent=1 // pred_check_branch
      %195 = sbr.rel (0) target = $region17
    $region16: #{tpu_custom_call.1} parent=1 // pred_region
      %196 = dma.done [#allocation3], 2048
    $region17: #{tpu_custom_call.1} parent=1 // pred_fallthru
      _
    %197 = vsyncpa [#allocation3], 1

</llo_original>
